<compile_context>
chip_gen: v5e
topology: v5e:2x2
jax: 0.10.0
libtpu: 0.0.40
codegen_flags: <defaults>
</compile_context>

<pallas_src>
import functools

import jax
import jax.numpy as jnp
from jax.experimental import pallas as pl
from jax.experimental.pallas import tpu as pltpu

EPS = 1e-5


# ----------------------------- kernel ---------------------------------------
def _make_kernel(has_proj, strided, mxu_dtype, h_out):
    """Fused conv1-bn1-relu-conv2-bn2-(+shortcut)-relu on packed activations."""

    def kernel(x_ref, band1_ref, band2_ref, red_ref, bcast_ref,
               g1_ref, b1_ref, g2_ref, b2_ref, *rest):
        if has_proj:
            bands_ref, gs_ref, bs_ref, out_ref = rest
        else:
            (out_ref,) = rest

        nrows = out_ref.shape[0]
        red = red_ref[...]          # (L, CP): one-hot(channel) / count  (reduce)
        bcast = bcast_ref[...]      # (CP, L): one-hot(channel)          (broadcast)

        # Image-boundary masks for the dy=0 / dy=2 taps, from an in-kernel iota
        # (no HBM mask inputs, no wrapper-side mask arrays).
        ho = jax.lax.broadcasted_iota(jnp.int32, (nrows, 1), 0) % h_out
        m_lo = (ho > 0).astype(jnp.float32)            # row above exists
        m_hi = (ho < h_out - 1).astype(jnp.float32)    # row below exists

        def mm(a, b):
            # MXU matmul; operands already in mxu_dtype, f32 accumulate.
            return jnp.dot(a, b, preferred_element_type=jnp.float32)

        def conv3x3(taps, band_ref):
            """3x3 conv over packed rows.

            taps: one mxu_dtype slab (dy handled by rolling the per-tap f32
            outputs +/-1 row and masking boundaries), or a tuple of 3
            pre-shifted slabs (stride>1 conv1, shifts/stride pre-applied)."""
            if isinstance(taps, tuple):
                return (mm(taps[0], band_ref[0]) + mm(taps[1], band_ref[1])
                        + mm(taps[2], band_ref[2]))
            p0 = mm(taps, band_ref[0])      # contribution destined for row+1
            p1 = mm(taps, band_ref[1])      # same-row contribution
            p2 = mm(taps, band_ref[2])      # contribution destined for row-1
            return (p1
                    + pltpu.roll(p0, 1, axis=0) * m_lo          # uses row-1
                    + pltpu.roll(p2, nrows - 1, axis=0) * m_hi)  # uses row+1

        def batchnorm(t, g_ref, b_ref):
            # Single-pass training-mode BN: sums taken while the conv result is
            # live; skinny one-hot reduce to per-channel stats, then one-hot
            # broadcast of scale/shift back to lanes (replaces the (L,L) pmat).
            csum = jnp.sum(t, axis=0, keepdims=True)               # (1, L)
            csq = jnp.sum(t * t, axis=0, keepdims=True)            # (1, L)
            mean = jnp.dot(csum, red, preferred_element_type=jnp.float32)  # (1,CP)
            ex2 = jnp.dot(csq, red, preferred_element_type=jnp.float32)
            var = ex2 - mean * mean                                # biased (torch)
            scale_c = g_ref[...] * jax.lax.rsqrt(var + EPS)        # EUP rsqrt
            shift_c = b_ref[...] - mean * scale_c
            scale_l = jnp.dot(scale_c, bcast, preferred_element_type=jnp.float32)
            shift_l = jnp.dot(shift_c, bcast, preferred_element_type=jnp.float32)
            return t * scale_l + shift_l

        # ---- conv1 + bn1 + relu -------------------------------------------
        if strided:
            x0 = x_ref[0].astype(mxu_dtype)
            x1 = x_ref[1].astype(mxu_dtype)
            x2 = x_ref[2].astype(mxu_dtype)
            y = conv3x3((x0, x1, x2), band1_ref)
            x_center_m = x1
            x_identity = None if has_proj else x_ref[1]
        else:
            x_f32 = x_ref[...]
            xm = x_f32.astype(mxu_dtype)     # cast ONCE; reused by the shortcut
            y = conv3x3(xm, band1_ref)
            x_center_m = xm
            x_identity = None if has_proj else x_f32
        y = jnp.maximum(batchnorm(y, g1_ref, b1_ref), 0.0)

        # ---- conv2 (stride 1) + bn2 ---------------------------------------
        ym = y.astype(mxu_dtype)             # cast ONCE; rolls act on f32 outputs
        z = batchnorm(conv3x3(ym, band2_ref), g2_ref, b2_ref)

        # ---- shortcut -------------------------------------------------------
        if has_proj:
            s = batchnorm(mm(x_center_m, bands_ref[...]), gs_ref, bs_ref)
        else:
            s = x_identity                   # identity: Cin==C, stride==1

        out_ref[...] = jnp.maximum(z + s, 0.0)

    return kernel


# ------------------------- wrapper-side glue ---------------------------------
def _conv_bands(w_oihw, w_in, w_out, stride, mxu_dtype):
    """(Cout,Cin,3,3) OIHW weights -> (3, Wi*Cin, Wo*Cout) banded matrices,
    one per dy tap; the dx taps, W padding and W stride are baked in."""
    wk = jnp.transpose(w_oihw, (2, 3, 1, 0)).astype(jnp.float32)   # (dy,dx,Ci,Co)
    cin, cout = wk.shape[2], wk.shape[3]
    wi = jnp.arange(w_in)[None, :, None]
    wo = jnp.arange(w_out)[None, None, :]
    dx = jnp.arange(3)[:, None, None]
    sel = (wi == wo * stride + dx - 1).astype(jnp.float32)         # (3, Wi, Wo)
    band = jnp.einsum("dab,ydio->yaibo", sel, wk)                  # (3,Wi,Ci,Wo,Co)
    return band.reshape(3, w_in * cin, w_out * cout).astype(mxu_dtype)


def _proj_band(wsc_oi11, w_in, w_out, stride, mxu_dtype):
    """1x1 (strided) projection as a block-diagonal (Wi*Cin, Wo*Cout) matrix."""
    wsc = jnp.transpose(wsc_oi11[:, :, 0, 0]).astype(jnp.float32)  # (Cin, Cout)
    sel = (jnp.arange(w_in)[:, None]
           == jnp.arange(w_out)[None, :] * stride).astype(jnp.float32)
    band = jnp.einsum("ab,io->aibo", sel, wsc)
    return band.reshape(w_in * wsc.shape[0], w_out * wsc.shape[1]).astype(mxu_dtype)


@functools.partial(jax.jit, static_argnames=("stride", "mxu_dtype"))
def basic_block_pallas(x_nchw, params, *, stride=1, mxu_dtype=jnp.bfloat16):
    """BasicBlock forward.  x_nchw: (N, Cin, H, W) f32 -> (N, C, Ho, Wo) f32."""
    N, Cin, H, W = x_nchw.shape
    C = params["w1"].shape[0]
    has_proj = "wsc" in params
    Ho = (H - 1) // stride + 1          # 3x3, pad=1
    Wo = (W - 1) // stride + 1
    L = Wo * C

    # NCHW -> packed (rows = N*H, lanes = W*Cin): one layout pass each way.
    # TODO(synk): when chaining blocks, keep activations in this packed layout
    # end-to-end and drop the NCHW<->packed transposes entirely.
    x = jnp.transpose(x_nchw, (0, 2, 3, 1))
    if stride == 1:
        # conv1's dy taps are built in-kernel (roll + mask): ship ONE slab.
        x_arg = x.reshape(N * H, W * Cin)
    else:
        # stride>1: the strided row set differs per dy tap -> pre-shifted slabs.
        xp = jnp.pad(x, ((0, 0), (1, 1), (0, 0), (0, 0)))
        slabs = [jax.lax.slice_in_dim(xp, d, d + (Ho - 1) * stride + 1,
                                      stride, axis=1).reshape(N * Ho, W * Cin)
                 for d in range(3)]
        x_arg = jnp.stack(slabs, axis=0)                           # (3,N*Ho,W*Cin)

    # TODO(synk): at realistic widths the banded weights are only ~3*Cin/W
    # dense; at real ResNet sizes tile Wo (a few image columns x C per lane
    # tile) into the grid so each tile's band is nearly dense.
    band1 = _conv_bands(params["w1"], W, Wo, stride, mxu_dtype)    # (3, W*Cin, L)
    band2 = _conv_bands(params["w2"], Wo, Wo, 1, mxu_dtype)        # (3, L, L)

    # Skinny BN reduce / broadcast one-hots (replace the old (L,L) projector).
    # CP pads the channel axis to a full 128-lane tile; zero pad columns/rows
    # contribute nothing.
    CP = ((C + 127) // 128) * 128
    onehot = (jnp.arange(L)[:, None] % C
              == jnp.arange(CP)[None, :]).astype(jnp.float32)      # (L, CP)
    red = onehot / float(N * Ho * Wo)                              # mean reduce
    bcast = onehot.T                                               # (CP, L)

    def cvec(v):                                                   # (C,) -> (1, CP)
        return jnp.pad(v.astype(jnp.float32), (0, CP - C)).reshape(1, CP)

    args = [x_arg, band1, band2, red, bcast,
            cvec(params["g1"]), cvec(params["b1"]),
            cvec(params["g2"]), cvec(params["b2"])]
    if has_proj:
        args += [_proj_band(params["wsc"], W, Wo, stride, mxu_dtype),
                 cvec(params["gsc"]), cvec(params["bsc"])]

    out = pl.pallas_call(
        _make_kernel(has_proj, stride > 1, mxu_dtype, Ho),
        out_shape=jax.ShapeDtypeStruct((N * Ho, L), jnp.float32),  # lane-dense
    )(*args)
    return jnp.transpose(out.reshape(N, Ho, Wo, C), (0, 3, 1, 2))  # back to NCHW


# ------------------------- pure-JAX reference (NCHW) -------------------------
def _ref_forward(x, p, stride=1):
    def conv(inp, w, s, pad):
        return jax.lax.conv_general_dilated(
            inp, w, (s, s), ((pad, pad), (pad, pad)),
            dimension_numbers=("NCHW", "OIHW", "NCHW"))

    def bn(inp, g, b):
        mean = inp.mean(axis=(0, 2, 3), keepdims=True)
        var = ((inp - mean) ** 2).mean(axis=(0, 2, 3), keepdims=True)
        return ((inp - mean) * jax.lax.rsqrt(var + EPS)
                * g.reshape(1, -1, 1, 1) + b.reshape(1, -1, 1, 1))

    out = jax.nn.relu(bn(conv(x, p["w1"], stride, 1), p["g1"], p["b1"]))
    out = bn(conv(out, p["w2"], 1, 1), p["g2"], p["b2"])
    if "wsc" in p:
        sc = bn(conv(x, p["wsc"], stride, 0), p["gsc"], p["bsc"])
    else:
        sc = x
    return jax.nn.relu(out + sc)


def _make_params(key, cin, c, with_proj):
    ks = jax.random.split(key, 9)
    p = {
        "w1": 0.2 * jax.random.normal(ks[0], (c, cin, 3, 3), jnp.float32),
        "g1": 1.0 + 0.1 * jax.random.normal(ks[1], (c,), jnp.float32),
        "b1": 0.1 * jax.random.normal(ks[2], (c,), jnp.float32),
        "w2": 0.2 * jax.random.normal(ks[3], (c, c, 3, 3), jnp.float32),
        "g2": 1.0 + 0.1 * jax.random.normal(ks[4], (c,), jnp.float32),
        "b2": 0.1 * jax.random.normal(ks[5], (c,), jnp.float32),
    }
    if with_proj:
        p["wsc"] = 0.2 * jax.random.normal(ks[6], (c, cin, 1, 1), jnp.float32)
        p["gsc"] = 1.0 + 0.1 * jax.random.normal(ks[7], (c,), jnp.float32)
        p["bsc"] = 0.1 * jax.random.normal(ks[8], (c,), jnp.float32)
    return p


if __name__ == "__main__":
    key = jax.random.PRNGKey(0)

    # (name, N, Cin, C, H, W, stride, proj, mxu_dtype, rtol, atol)
    # The f32 runs are tight bit-level checks; the bf16 run exercises the
    # v6e/v7x fast path (bf16 MXU rounding => looser tolerance).
    cases = [
        ("proj_s1_f32", 2, 4, 8, 16, 16, 1, True, jnp.float32, 1e-3, 2e-3),
        ("proj_s1_bf16", 2, 4, 8, 16, 16, 1, True, jnp.bfloat16, 5e-2, 5e-2),
        ("ident_s1_f32", 2, 8, 8, 16, 16, 1, False, jnp.float32, 1e-3, 2e-3),
        ("proj_s2_f32", 2, 8, 16, 16, 16, 2, True, jnp.float32, 1e-3, 2e-3),
    ]
    for name, N, Cin, C, H, W, stride, proj, mxu, rtol, atol in cases:
        key, kp, kx = jax.random.split(key, 3)
        params = _make_params(kp, Cin, C, proj)
        x = jax.random.normal(kx, (N, Cin, H, W), jnp.float32)

        out = jax.block_until_ready(
            basic_block_pallas(x, params, stride=stride, mxu_dtype=mxu))
        ref = jax.block_until_ready(_ref_forward(x, params, stride=stride))

        assert out.shape == ref.shape, (name, out.shape, ref.shape)
        max_err = float(jnp.max(jnp.abs(out - ref)))
        assert jnp.allclose(out, ref, rtol=rtol, atol=atol), (name, max_err)

    print("KERNEL_OK")
</pallas_src>

<mosaic_0001>
module attributes {stable_mosaic.version = 11 : i64} {
  func.func @kernel(%arg0: memref<32x64xf32, #tpu.memory_space<vmem>>, %arg1: memref<3x64x128xf32, #tpu.memory_space<vmem>>, %arg2: memref<3x128x128xf32, #tpu.memory_space<vmem>>, %arg3: memref<128x128xf32, #tpu.memory_space<vmem>>, %arg4: memref<128x128xf32, #tpu.memory_space<vmem>>, %arg5: memref<1x128xf32, #tpu.memory_space<vmem>>, %arg6: memref<1x128xf32, #tpu.memory_space<vmem>>, %arg7: memref<1x128xf32, #tpu.memory_space<vmem>>, %arg8: memref<1x128xf32, #tpu.memory_space<vmem>>, %arg9: memref<64x128xf32, #tpu.memory_space<vmem>>, %arg10: memref<1x128xf32, #tpu.memory_space<vmem>>, %arg11: memref<1x128xf32, #tpu.memory_space<vmem>>, %arg12: memref<32x128xf32, #tpu.memory_space<vmem>>) attributes {dimension_semantics = [], scalar_prefetch = 0 : i64, scratch_operands = 0 : i64, tpu.core_type = #tpu.core_type<tc>} {
    %c0 = arith.constant 0 : index
    %c0_0 = arith.constant 0 : index
    %0 = vector.load %arg3[%c0, %c0_0] : memref<128x128xf32, #tpu.memory_space<vmem>>, vector<128x128xf32>
    %c0_1 = arith.constant 0 : index
    %c0_2 = arith.constant 0 : index
    %1 = vector.load %arg4[%c0_1, %c0_2] : memref<128x128xf32, #tpu.memory_space<vmem>>, vector<128x128xf32>
    %2 = tpu.iota {dimensions = array<i32: 0>} : vector<32x1xi32>
    %c16_i32 = arith.constant 16 : i32
    %c0_i32 = arith.constant 0 : i32
    %3 = arith.cmpi eq, %c16_i32, %c0_i32 : i32
    %c1_i32 = arith.constant 1 : i32
    %4 = arith.select %3, %c1_i32, %c16_i32 : i32
    %5 = vector.broadcast %4 : i32 to vector<32x1xi32>
    %6 = arith.remsi %2, %5 : vector<32x1xi32>
    %c0_i32_3 = arith.constant 0 : i32
    %7 = vector.broadcast %c0_i32_3 : i32 to vector<32x1xi32>
    %8 = arith.cmpi ne, %6, %7 : vector<32x1xi32>
    %c0_i32_4 = arith.constant 0 : i32
    %9 = vector.broadcast %c0_i32_4 : i32 to vector<32x1xi32>
    %10 = arith.cmpi slt, %6, %9 : vector<32x1xi32>
    %c0_i32_5 = arith.constant 0 : i32
    %11 = arith.cmpi slt, %4, %c0_i32_5 : i32
    %12 = vector.broadcast %11 : i1 to vector<32x1xi1>
    %13 = vector.broadcast %12 : vector<32x1xi1> to vector<32x1xi1>
    %14 = arith.xori %10, %13 : vector<32x1xi1>
    %15 = arith.andi %14, %8 : vector<32x1xi1>
    %16 = vector.broadcast %4 : i32 to vector<32x1xi32>
    %17 = arith.addi %6, %16 : vector<32x1xi32>
    %18 = arith.select %15, %17, %6 : vector<32x1xi1>, vector<32x1xi32>
    %c0_i32_6 = arith.constant 0 : i32
    %19 = vector.broadcast %c0_i32_6 : i32 to vector<32x1xi32>
    %20 = arith.cmpi sgt, %18, %19 : vector<32x1xi32>
    %21 = arith.extui %20 : vector<32x1xi1> to vector<32x1xi32>
    %22 = arith.sitofp %21 : vector<32x1xi32> to vector<32x1xf32>
    %c15_i32 = arith.constant 15 : i32
    %23 = vector.broadcast %c15_i32 : i32 to vector<32x1xi32>
    %24 = arith.cmpi slt, %18, %23 : vector<32x1xi32>
    %25 = arith.extui %24 : vector<32x1xi1> to vector<32x1xi32>
    %26 = arith.sitofp %25 : vector<32x1xi32> to vector<32x1xf32>
    %c0_7 = arith.constant 0 : index
    %c0_8 = arith.constant 0 : index
    %27 = vector.load %arg0[%c0_7, %c0_8] : memref<32x64xf32, #tpu.memory_space<vmem>>, vector<32x64xf32>
    %c0_9 = arith.constant 0 : index
    %c0_10 = arith.constant 0 : index
    %c0_11 = arith.constant 0 : index
    %28 = vector.load %arg1[%c0_9, %c0_10, %c0_11] : memref<3x64x128xf32, #tpu.memory_space<vmem>>, vector<1x64x128xf32>
    %29 = vector.shape_cast %28 : vector<1x64x128xf32> to vector<64x128xf32>
    %cst = arith.constant dense<0.000000e+00> : vector<32x128xf32>
    %30 = tpu.matmul %27, %29, %cst {dimension_numbers = #tpu.dot_dimension_numbers<[1], [0], [0], [1], [0, 0, 1, 1], [], []>} : vector<32x64xf32>, vector<64x128xf32>, vector<32x128xf32> -> vector<32x128xf32>
    %c1 = arith.constant 1 : index
    %c0_12 = arith.constant 0 : index
    %c0_13 = arith.constant 0 : index
    %31 = vector.load %arg1[%c1, %c0_12, %c0_13] : memref<3x64x128xf32, #tpu.memory_space<vmem>>, vector<1x64x128xf32>
    %32 = vector.shape_cast %31 : vector<1x64x128xf32> to vector<64x128xf32>
    %cst_14 = arith.constant dense<0.000000e+00> : vector<32x128xf32>
    %33 = tpu.matmul %27, %32, %cst_14 {dimension_numbers = #tpu.dot_dimension_numbers<[1], [0], [0], [1], [0, 0, 1, 1], [], []>} : vector<32x64xf32>, vector<64x128xf32>, vector<32x128xf32> -> vector<32x128xf32>
    %c2 = arith.constant 2 : index
    %c0_15 = arith.constant 0 : index
    %c0_16 = arith.constant 0 : index
    %34 = vector.load %arg1[%c2, %c0_15, %c0_16] : memref<3x64x128xf32, #tpu.memory_space<vmem>>, vector<1x64x128xf32>
    %35 = vector.shape_cast %34 : vector<1x64x128xf32> to vector<64x128xf32>
    %cst_17 = arith.constant dense<0.000000e+00> : vector<32x128xf32>
    %36 = tpu.matmul %27, %35, %cst_17 {dimension_numbers = #tpu.dot_dimension_numbers<[1], [0], [0], [1], [0, 0, 1, 1], [], []>} : vector<32x64xf32>, vector<64x128xf32>, vector<32x128xf32> -> vector<32x128xf32>
    %c1_i32_18 = arith.constant 1 : i32
    %37 = tpu.dynamic_rotate %30 by %c1_i32_18 dim 0 : vector<32x128xf32>, i32 -> vector<32x128xf32>
    %38 = vector.broadcast %22 : vector<32x1xf32> to vector<32x128xf32>
    %39 = arith.mulf %37, %38 : vector<32x128xf32>
    %40 = arith.addf %33, %39 : vector<32x128xf32>
    %c31_i32 = arith.constant 31 : i32
    %41 = tpu.dynamic_rotate %36 by %c31_i32 dim 0 : vector<32x128xf32>, i32 -> vector<32x128xf32>
    %42 = vector.broadcast %26 : vector<32x1xf32> to vector<32x128xf32>
    %43 = arith.mulf %41, %42 : vector<32x128xf32>
    %44 = arith.addf %40, %43 : vector<32x128xf32>
    %cst_19 = arith.constant dense<0.000000e+00> : vector<128xf32>
    %45 = vector.multi_reduction <add>, %44, %cst_19 [0] : vector<32x128xf32> to vector<128xf32>
    %46 = vector.shape_cast %45 : vector<128xf32> to vector<1x128xf32>
    %47 = arith.mulf %44, %44 : vector<32x128xf32>
    %cst_20 = arith.constant dense<0.000000e+00> : vector<128xf32>
    %48 = vector.multi_reduction <add>, %47, %cst_20 [0] : vector<32x128xf32> to vector<128xf32>
    %49 = vector.shape_cast %48 : vector<128xf32> to vector<1x128xf32>
    %cst_21 = arith.constant dense<0.000000e+00> : vector<1x128xf32>
    %50 = tpu.matmul %46, %0, %cst_21 {dimension_numbers = #tpu.dot_dimension_numbers<[1], [0], [0], [1], [0, 0, 1, 1], [], []>} : vector<1x128xf32>, vector<128x128xf32>, vector<1x128xf32> -> vector<1x128xf32>
    %cst_22 = arith.constant dense<0.000000e+00> : vector<1x128xf32>
    %51 = tpu.matmul %49, %0, %cst_22 {dimension_numbers = #tpu.dot_dimension_numbers<[1], [0], [0], [1], [0, 0, 1, 1], [], []>} : vector<1x128xf32>, vector<128x128xf32>, vector<1x128xf32> -> vector<1x128xf32>
    %52 = arith.mulf %50, %50 : vector<1x128xf32>
    %53 = arith.subf %51, %52 : vector<1x128xf32>
    %c0_23 = arith.constant 0 : index
    %c0_24 = arith.constant 0 : index
    %54 = vector.load %arg5[%c0_23, %c0_24] : memref<1x128xf32, #tpu.memory_space<vmem>>, vector<1x128xf32>
    %cst_25 = arith.constant 9.99999974E-6 : f32
    %55 = vector.broadcast %cst_25 : f32 to vector<1x128xf32>
    %56 = arith.addf %53, %55 : vector<1x128xf32>
    %57 = math.rsqrt %56 : vector<1x128xf32>
    %58 = arith.mulf %54, %57 : vector<1x128xf32>
    %c0_26 = arith.constant 0 : index
    %c0_27 = arith.constant 0 : index
    %59 = vector.load %arg6[%c0_26, %c0_27] : memref<1x128xf32, #tpu.memory_space<vmem>>, vector<1x128xf32>
    %60 = arith.mulf %50, %58 : vector<1x128xf32>
    %61 = arith.subf %59, %60 : vector<1x128xf32>
    %cst_28 = arith.constant dense<0.000000e+00> : vector<1x128xf32>
    %62 = tpu.matmul %58, %1, %cst_28 {dimension_numbers = #tpu.dot_dimension_numbers<[1], [0], [0], [1], [0, 0, 1, 1], [], []>} : vector<1x128xf32>, vector<128x128xf32>, vector<1x128xf32> -> vector<1x128xf32>
    %cst_29 = arith.constant dense<0.000000e+00> : vector<1x128xf32>
    %63 = tpu.matmul %61, %1, %cst_29 {dimension_numbers = #tpu.dot_dimension_numbers<[1], [0], [0], [1], [0, 0, 1, 1], [], []>} : vector<1x128xf32>, vector<128x128xf32>, vector<1x128xf32> -> vector<1x128xf32>
    %64 = vector.broadcast %62 : vector<1x128xf32> to vector<32x128xf32>
    %65 = arith.mulf %44, %64 : vector<32x128xf32>
    %66 = vector.broadcast %63 : vector<1x128xf32> to vector<32x128xf32>
    %67 = arith.addf %65, %66 : vector<32x128xf32>
    %cst_30 = arith.constant 0.000000e+00 : f32
    %68 = vector.broadcast %cst_30 : f32 to vector<32x128xf32>
    %69 = arith.maximumf %67, %68 : vector<32x128xf32>
    %c0_31 = arith.constant 0 : index
    %c0_32 = arith.constant 0 : index
    %c0_33 = arith.constant 0 : index
    %70 = vector.load %arg2[%c0_31, %c0_32, %c0_33] : memref<3x128x128xf32, #tpu.memory_space<vmem>>, vector<1x128x128xf32>
    %71 = vector.shape_cast %70 : vector<1x128x128xf32> to vector<128x128xf32>
    %cst_34 = arith.constant dense<0.000000e+00> : vector<32x128xf32>
    %72 = tpu.matmul %69, %71, %cst_34 {dimension_numbers = #tpu.dot_dimension_numbers<[1], [0], [0], [1], [0, 0, 1, 1], [], []>} : vector<32x128xf32>, vector<128x128xf32>, vector<32x128xf32> -> vector<32x128xf32>
    %c1_35 = arith.constant 1 : index
    %c0_36 = arith.constant 0 : index
    %c0_37 = arith.constant 0 : index
    %73 = vector.load %arg2[%c1_35, %c0_36, %c0_37] : memref<3x128x128xf32, #tpu.memory_space<vmem>>, vector<1x128x128xf32>
    %74 = vector.shape_cast %73 : vector<1x128x128xf32> to vector<128x128xf32>
    %cst_38 = arith.constant dense<0.000000e+00> : vector<32x128xf32>
    %75 = tpu.matmul %69, %74, %cst_38 {dimension_numbers = #tpu.dot_dimension_numbers<[1], [0], [0], [1], [0, 0, 1, 1], [], []>} : vector<32x128xf32>, vector<128x128xf32>, vector<32x128xf32> -> vector<32x128xf32>
    %c2_39 = arith.constant 2 : index
    %c0_40 = arith.constant 0 : index
    %c0_41 = arith.constant 0 : index
    %76 = vector.load %arg2[%c2_39, %c0_40, %c0_41] : memref<3x128x128xf32, #tpu.memory_space<vmem>>, vector<1x128x128xf32>
    %77 = vector.shape_cast %76 : vector<1x128x128xf32> to vector<128x128xf32>
    %cst_42 = arith.constant dense<0.000000e+00> : vector<32x128xf32>
    %78 = tpu.matmul %69, %77, %cst_42 {dimension_numbers = #tpu.dot_dimension_numbers<[1], [0], [0], [1], [0, 0, 1, 1], [], []>} : vector<32x128xf32>, vector<128x128xf32>, vector<32x128xf32> -> vector<32x128xf32>
    %c1_i32_43 = arith.constant 1 : i32
    %79 = tpu.dynamic_rotate %72 by %c1_i32_43 dim 0 : vector<32x128xf32>, i32 -> vector<32x128xf32>
    %80 = vector.broadcast %22 : vector<32x1xf32> to vector<32x128xf32>
    %81 = arith.mulf %79, %80 : vector<32x128xf32>
    %82 = arith.addf %75, %81 : vector<32x128xf32>
    %c31_i32_44 = arith.constant 31 : i32
    %83 = tpu.dynamic_rotate %78 by %c31_i32_44 dim 0 : vector<32x128xf32>, i32 -> vector<32x128xf32>
    %84 = vector.broadcast %26 : vector<32x1xf32> to vector<32x128xf32>
    %85 = arith.mulf %83, %84 : vector<32x128xf32>
    %86 = arith.addf %82, %85 : vector<32x128xf32>
    %cst_45 = arith.constant dense<0.000000e+00> : vector<128xf32>
    %87 = vector.multi_reduction <add>, %86, %cst_45 [0] : vector<32x128xf32> to vector<128xf32>
    %88 = vector.shape_cast %87 : vector<128xf32> to vector<1x128xf32>
    %89 = arith.mulf %86, %86 : vector<32x128xf32>
    %cst_46 = arith.constant dense<0.000000e+00> : vector<128xf32>
    %90 = vector.multi_reduction <add>, %89, %cst_46 [0] : vector<32x128xf32> to vector<128xf32>
    %91 = vector.shape_cast %90 : vector<128xf32> to vector<1x128xf32>
    %cst_47 = arith.constant dense<0.000000e+00> : vector<1x128xf32>
    %92 = tpu.matmul %88, %0, %cst_47 {dimension_numbers = #tpu.dot_dimension_numbers<[1], [0], [0], [1], [0, 0, 1, 1], [], []>} : vector<1x128xf32>, vector<128x128xf32>, vector<1x128xf32> -> vector<1x128xf32>
    %cst_48 = arith.constant dense<0.000000e+00> : vector<1x128xf32>
    %93 = tpu.matmul %91, %0, %cst_48 {dimension_numbers = #tpu.dot_dimension_numbers<[1], [0], [0], [1], [0, 0, 1, 1], [], []>} : vector<1x128xf32>, vector<128x128xf32>, vector<1x128xf32> -> vector<1x128xf32>
    %94 = arith.mulf %92, %92 : vector<1x128xf32>
    %95 = arith.subf %93, %94 : vector<1x128xf32>
    %c0_49 = arith.constant 0 : index
    %c0_50 = arith.constant 0 : index
    %96 = vector.load %arg7[%c0_49, %c0_50] : memref<1x128xf32, #tpu.memory_space<vmem>>, vector<1x128xf32>
    %cst_51 = arith.constant 9.99999974E-6 : f32
    %97 = vector.broadcast %cst_51 : f32 to vector<1x128xf32>
    %98 = arith.addf %95, %97 : vector<1x128xf32>
    %99 = math.rsqrt %98 : vector<1x128xf32>
    %100 = arith.mulf %96, %99 : vector<1x128xf32>
    %c0_52 = arith.constant 0 : index
    %c0_53 = arith.constant 0 : index
    %101 = vector.load %arg8[%c0_52, %c0_53] : memref<1x128xf32, #tpu.memory_space<vmem>>, vector<1x128xf32>
    %102 = arith.mulf %92, %100 : vector<1x128xf32>
    %103 = arith.subf %101, %102 : vector<1x128xf32>
    %cst_54 = arith.constant dense<0.000000e+00> : vector<1x128xf32>
    %104 = tpu.matmul %100, %1, %cst_54 {dimension_numbers = #tpu.dot_dimension_numbers<[1], [0], [0], [1], [0, 0, 1, 1], [], []>} : vector<1x128xf32>, vector<128x128xf32>, vector<1x128xf32> -> vector<1x128xf32>
    %cst_55 = arith.constant dense<0.000000e+00> : vector<1x128xf32>
    %105 = tpu.matmul %103, %1, %cst_55 {dimension_numbers = #tpu.dot_dimension_numbers<[1], [0], [0], [1], [0, 0, 1, 1], [], []>} : vector<1x128xf32>, vector<128x128xf32>, vector<1x128xf32> -> vector<1x128xf32>
    %106 = vector.broadcast %104 : vector<1x128xf32> to vector<32x128xf32>
    %107 = arith.mulf %86, %106 : vector<32x128xf32>
    %108 = vector.broadcast %105 : vector<1x128xf32> to vector<32x128xf32>
    %109 = arith.addf %107, %108 : vector<32x128xf32>
    %c0_56 = arith.constant 0 : index
    %c0_57 = arith.constant 0 : index
    %110 = vector.load %arg9[%c0_56, %c0_57] : memref<64x128xf32, #tpu.memory_space<vmem>>, vector<64x128xf32>
    %cst_58 = arith.constant dense<0.000000e+00> : vector<32x128xf32>
    %111 = tpu.matmul %27, %110, %cst_58 {dimension_numbers = #tpu.dot_dimension_numbers<[1], [0], [0], [1], [0, 0, 1, 1], [], []>} : vector<32x64xf32>, vector<64x128xf32>, vector<32x128xf32> -> vector<32x128xf32>
    %cst_59 = arith.constant dense<0.000000e+00> : vector<128xf32>
    %112 = vector.multi_reduction <add>, %111, %cst_59 [0] : vector<32x128xf32> to vector<128xf32>
    %113 = vector.shape_cast %112 : vector<128xf32> to vector<1x128xf32>
    %114 = arith.mulf %111, %111 : vector<32x128xf32>
    %cst_60 = arith.constant dense<0.000000e+00> : vector<128xf32>
    %115 = vector.multi_reduction <add>, %114, %cst_60 [0] : vector<32x128xf32> to vector<128xf32>
    %116 = vector.shape_cast %115 : vector<128xf32> to vector<1x128xf32>
    %cst_61 = arith.constant dense<0.000000e+00> : vector<1x128xf32>
    %117 = tpu.matmul %113, %0, %cst_61 {dimension_numbers = #tpu.dot_dimension_numbers<[1], [0], [0], [1], [0, 0, 1, 1], [], []>} : vector<1x128xf32>, vector<128x128xf32>, vector<1x128xf32> -> vector<1x128xf32>
    %cst_62 = arith.constant dense<0.000000e+00> : vector<1x128xf32>
    %118 = tpu.matmul %116, %0, %cst_62 {dimension_numbers = #tpu.dot_dimension_numbers<[1], [0], [0], [1], [0, 0, 1, 1], [], []>} : vector<1x128xf32>, vector<128x128xf32>, vector<1x128xf32> -> vector<1x128xf32>
    %119 = arith.mulf %117, %117 : vector<1x128xf32>
    %120 = arith.subf %118, %119 : vector<1x128xf32>
    %c0_63 = arith.constant 0 : index
    %c0_64 = arith.constant 0 : index
    %121 = vector.load %arg10[%c0_63, %c0_64] : memref<1x128xf32, #tpu.memory_space<vmem>>, vector<1x128xf32>
    %cst_65 = arith.constant 9.99999974E-6 : f32
    %122 = vector.broadcast %cst_65 : f32 to vector<1x128xf32>
    %123 = arith.addf %120, %122 : vector<1x128xf32>
    %124 = math.rsqrt %123 : vector<1x128xf32>
    %125 = arith.mulf %121, %124 : vector<1x128xf32>
    %c0_66 = arith.constant 0 : index
    %c0_67 = arith.constant 0 : index
    %126 = vector.load %arg11[%c0_66, %c0_67] : memref<1x128xf32, #tpu.memory_space<vmem>>, vector<1x128xf32>
    %127 = arith.mulf %117, %125 : vector<1x128xf32>
    %128 = arith.subf %126, %127 : vector<1x128xf32>
    %cst_68 = arith.constant dense<0.000000e+00> : vector<1x128xf32>
    %129 = tpu.matmul %125, %1, %cst_68 {dimension_numbers = #tpu.dot_dimension_numbers<[1], [0], [0], [1], [0, 0, 1, 1], [], []>} : vector<1x128xf32>, vector<128x128xf32>, vector<1x128xf32> -> vector<1x128xf32>
    %cst_69 = arith.constant dense<0.000000e+00> : vector<1x128xf32>
    %130 = tpu.matmul %128, %1, %cst_69 {dimension_numbers = #tpu.dot_dimension_numbers<[1], [0], [0], [1], [0, 0, 1, 1], [], []>} : vector<1x128xf32>, vector<128x128xf32>, vector<1x128xf32> -> vector<1x128xf32>
    %131 = vector.broadcast %129 : vector<1x128xf32> to vector<32x128xf32>
    %132 = arith.mulf %111, %131 : vector<32x128xf32>
    %133 = vector.broadcast %130 : vector<1x128xf32> to vector<32x128xf32>
    %134 = arith.addf %132, %133 : vector<32x128xf32>
    %135 = arith.addf %109, %134 : vector<32x128xf32>
    %cst_70 = arith.constant 0.000000e+00 : f32
    %136 = vector.broadcast %cst_70 : f32 to vector<32x128xf32>
    %137 = arith.maximumf %135, %136 : vector<32x128xf32>
    %c0_71 = arith.constant 0 : index
    %c0_72 = arith.constant 0 : index
    %138 = vector.load %arg12[%c0_71, %c0_72] : memref<32x128xf32, #tpu.memory_space<vmem>>, vector<32x128xf32>
    tpu.vector_store %arg12[%c0_71, %c0_72], %137 {strides = array<i32>} : memref<32x128xf32, #tpu.memory_space<vmem>>, vector<32x128xf32>,
    return
  }
}

</mosaic_0001>

<llo_original>
// kernel: basic_block_pallas.1
$region0: #{basic_block_pallas.1}
  #allocation0 [shape = 'u32[]', space=smem, size = 0x4, offset = 0x4, fixed_abs, tag = 'smem constant byte address 0x4 - core index']
  #allocation1 [shape = 'u32[72,128]{1,0:T(1,128)}', space=vmem, size = 0x9000, scoped, tag = 'internal scratch']
  %s0 = inlined_call_operand.vmem [shape: f32[32,64], index: 0, kind: input, shape index: {}]
  %s1 = inlined_call_operand.vmem [shape: f32[3,64,128], index: 1, kind: input, shape index: {}]
  %s2 = inlined_call_operand.vmem [shape: f32[3,128,128], index: 2, kind: input, shape index: {}]
  %s3 = inlined_call_operand.vmem [shape: f32[128,128], index: 3, kind: input, shape index: {}]
  %s4 = inlined_call_operand.vmem [shape: f32[128,128], index: 4, kind: input, shape index: {}]
  %s5 = inlined_call_operand.vmem [shape: f32[1,128], index: 5, kind: input, shape index: {}]
  %s6 = inlined_call_operand.vmem [shape: f32[1,128], index: 6, kind: input, shape index: {}]
  %s7 = inlined_call_operand.vmem [shape: f32[1,128], index: 7, kind: input, shape index: {}]
  %s8 = inlined_call_operand.vmem [shape: f32[1,128], index: 8, kind: input, shape index: {}]
  %s9 = inlined_call_operand.vmem [shape: f32[64,128], index: 9, kind: input, shape index: {}]
  %s10 = inlined_call_operand.vmem [shape: f32[1,128], index: 10, kind: input, shape index: {}]
  %s11 = inlined_call_operand.vmem [shape: f32[1,128], index: 11, kind: input, shape index: {}]
  %s12 = inlined_call_operand.vmem [shape: f32[32,128], index: 12, kind: output, shape index: {}]
  %s13 = sld [smem:[#allocation0]]
  $region58: #{basic_block_pallas.1} parent=0
    _
  %s15 = ssub.s32 1, %s13
  %s16 = scalar_select 0, %s15, %s13
  // Predicated region
  $region2: #{basic_block_pallas.1} parent=0 // pred_check
    _
  $region3: #{basic_block_pallas.1} parent=0 // pred_check_branch
    %18 = sbr.rel (0) target = $region5
  $region4: #{basic_block_pallas.1} parent=0 // pred_region
    _
  $region5: #{basic_block_pallas.1} parent=0 // pred_fallthru
    _
  // Predicated region
  $region6: #{basic_block_pallas.1} parent=0 // pred_check
    _
  $region7: #{basic_block_pallas.1} parent=0 // pred_check_branch
    %20 = sbr.rel (0) target = $region9
  $region8: #{basic_block_pallas.1} parent=0 // pred_region
    _
  $region9: #{basic_block_pallas.1} parent=0 // pred_fallthru
    _
  // Predicated region
  $region10: #{basic_block_pallas.1} parent=0 // pred_check
    _
  $region11: #{basic_block_pallas.1} parent=0 // pred_check_branch
    %22 = sbr.rel (0) target = $region13
  $region12: #{basic_block_pallas.1} parent=0 // pred_region
    _
  $region13: #{basic_block_pallas.1} parent=0 // pred_fallthru
    _
  // Predicated region
  $region14: #{basic_block_pallas.1} parent=0 // pred_check
    _
  $region15: #{basic_block_pallas.1} parent=0 // pred_check_branch
    %24 = sbr.rel (0) target = $region17
  $region16: #{basic_block_pallas.1} parent=0 // pred_region
    _
  $region17: #{basic_block_pallas.1} parent=0 // pred_fallthru
    _
  // Predicated region
  $region18: #{basic_block_pallas.1} parent=0 // pred_check
    _
  $region19: #{basic_block_pallas.1} parent=0 // pred_check_branch
    %26 = sbr.rel (0) target = $region21
  $region20: #{basic_block_pallas.1} parent=0 // pred_region
    _
  $region21: #{basic_block_pallas.1} parent=0 // pred_fallthru
    _
  // Predicated region
  $region22: #{basic_block_pallas.1} parent=0 // pred_check
    _
  $region23: #{basic_block_pallas.1} parent=0 // pred_check_branch
    %28 = sbr.rel (0) target = $region25
  $region24: #{basic_block_pallas.1} parent=0 // pred_region
    _
  $region25: #{basic_block_pallas.1} parent=0 // pred_fallthru
    _
  // Predicated region
  $region26: #{basic_block_pallas.1} parent=0 // pred_check
    _
  $region27: #{basic_block_pallas.1} parent=0 // pred_check_branch
    %30 = sbr.rel (0) target = $region29
  $region28: #{basic_block_pallas.1} parent=0 // pred_region
    _
  $region29: #{basic_block_pallas.1} parent=0 // pred_fallthru
    _
  // Predicated region
  $region30: #{basic_block_pallas.1} parent=0 // pred_check
    _
  $region31: #{basic_block_pallas.1} parent=0 // pred_check_branch
    %32 = sbr.rel (0) target = $region33
  $region32: #{basic_block_pallas.1} parent=0 // pred_region
    _
  $region33: #{basic_block_pallas.1} parent=0 // pred_fallthru
    _
  // Predicated region
  $region34: #{basic_block_pallas.1} parent=0 // pred_check
    _
  $region35: #{basic_block_pallas.1} parent=0 // pred_check_branch
    %34 = sbr.rel (0) target = $region37
  $region36: #{basic_block_pallas.1} parent=0 // pred_region
    _
  $region37: #{basic_block_pallas.1} parent=0 // pred_fallthru
    _
  // Predicated region
  $region38: #{basic_block_pallas.1} parent=0 // pred_check
    _
  $region39: #{basic_block_pallas.1} parent=0 // pred_check_branch
    %36 = sbr.rel (0) target = $region41
  $region40: #{basic_block_pallas.1} parent=0 // pred_region
    _
  $region41: #{basic_block_pallas.1} parent=0 // pred_fallthru
    _
  // Predicated region
  $region42: #{basic_block_pallas.1} parent=0 // pred_check
    _
  $region43: #{basic_block_pallas.1} parent=0 // pred_check_branch
    %38 = sbr.rel (0) target = $region45
  $region44: #{basic_block_pallas.1} parent=0 // pred_region
    _
  $region45: #{basic_block_pallas.1} parent=0 // pred_fallthru
    _
  // Predicated region
  $region46: #{basic_block_pallas.1} parent=0 // pred_check
    _
  $region47: #{basic_block_pallas.1} parent=0 // pred_check_branch
    %40 = sbr.rel (0) target = $region49
  $region48: #{basic_block_pallas.1} parent=0 // pred_region
    _
  $region49: #{basic_block_pallas.1} parent=0 // pred_fallthru
    _
  %v41 = vld [vmem:[%s3] sm:$0xff]
  %v42 = vld [vmem:[%s3 + $0x8] sm:$0xff]
  %v43 = vld [vmem:[%s3 + $0x10] sm:$0xff]
  %v44 = vld [vmem:[%s3 + $0x18] sm:$0xff]
  %v45 = vld [vmem:[%s3 + $0x20] sm:$0xff]
  %v46 = vld [vmem:[%s3 + $0x28] sm:$0xff]
  %v47 = vld [vmem:[%s3 + $0x30] sm:$0xff]
  %v48 = vld [vmem:[%s3 + $0x38] sm:$0xff]
  %v49 = vld [vmem:[%s3 + $0x40] sm:$0xff]
  %v50 = vld [vmem:[%s3 + $0x48] sm:$0xff]
  %v51 = vld [vmem:[%s3 + $0x50] sm:$0xff]
  %v52 = vld [vmem:[%s3 + $0x58] sm:$0xff]
  %v53 = vld [vmem:[%s3 + $0x60] sm:$0xff]
  %v54 = vld [vmem:[%s3 + $0x68] sm:$0xff]
  %v55 = vld [vmem:[%s3 + $0x70] sm:$0xff]
  %v56 = vld [vmem:[%s3 + $0x78] sm:$0xff]
  %v57 = vld [vmem:[%s4] sm:$0xff]
  %v58 = vld [vmem:[%s4 + $0x8] sm:$0xff]
  %v59 = vld [vmem:[%s4 + $0x10] sm:$0xff]
  %v60 = vld [vmem:[%s4 + $0x18] sm:$0xff]
  %v61 = vld [vmem:[%s4 + $0x20] sm:$0xff]
  %v62 = vld [vmem:[%s4 + $0x28] sm:$0xff]
  %v63 = vld [vmem:[%s4 + $0x30] sm:$0xff]
  %v64 = vld [vmem:[%s4 + $0x38] sm:$0xff]
  %v65 = vld [vmem:[%s4 + $0x40] sm:$0xff]
  %v66 = vld [vmem:[%s4 + $0x48] sm:$0xff]
  %v67 = vld [vmem:[%s4 + $0x50] sm:$0xff]
  %v68 = vld [vmem:[%s4 + $0x58] sm:$0xff]
  %v69 = vld [vmem:[%s4 + $0x60] sm:$0xff]
  %v70 = vld [vmem:[%s4 + $0x68] sm:$0xff]
  %v71 = vld [vmem:[%s4 + $0x70] sm:$0xff]
  %v72 = vld [vmem:[%s4 + $0x78] sm:$0xff]
  %v73 = vlaneseq
  %v74 = vshrl.u32 %v73, 7
  %v75 = vadd.s32 %v74, 8
  %v76 = vadd.s32 %v74, 16
  %v77 = vadd.s32 %v74, 24
  %vm78 = vcmp.lt.s32.totalorder %v74, 0
  %v79 = vsub.s32 0, %v74
  %v80 = vsel %vm78, %v79, %v74
  %v81 = vshrl.u32 %v80, 4
  %v82 = vand.u32 %v80, 15
  %v83 = vsub.s32 0, %v82
  %v84 = vsel %vm78, %v83, %v82
  %vm85 = vcmp.lt.s32.totalorder %v75, 0
  %v86 = vsub.s32 0, %v75
  %v87 = vsel %vm85, %v86, %v75
  %v88 = vshrl.u32 %v87, 4
  %v89 = vand.u32 %v87, 15
  %v90 = vsub.s32 0, %v89
  %v91 = vsel %vm85, %v90, %v89
  %vm92 = vcmp.lt.s32.totalorder %v76, 0
  %v93 = vsub.s32 0, %v76
  %v94 = vsel %vm92, %v93, %v76
  %v95 = vshrl.u32 %v94, 4
  %v96 = vand.u32 %v94, 15
  %v97 = vsub.s32 0, %v96
  %v98 = vsel %vm92, %v97, %v96
  %vm99 = vcmp.lt.s32.totalorder %v77, 0
  %v100 = vsub.s32 0, %v77
  %v101 = vsel %vm99, %v100, %v77
  %v102 = vshrl.u32 %v101, 4
  %v103 = vand.u32 %v101, 15
  %v104 = vsub.s32 0, %v103
  %v105 = vsel %vm99, %v104, %v103
  %vm106 = vcmp.ne.s32.totalorder %v84, 0
  %vm107 = vcmp.ne.s32.totalorder %v91, 0
  %vm108 = vcmp.ne.s32.totalorder %v98, 0
  %vm109 = vcmp.ne.s32.totalorder %v105, 0
  %vm110 = vcmp.lt.s32.totalorder %v84, 0
  %vm111 = vcmp.lt.s32.totalorder %v91, 0
  %vm112 = vcmp.lt.s32.totalorder %v98, 0
  %vm113 = vcmp.lt.s32.totalorder %v105, 0
  %vm114 = vmand %vm110, %vm106
  %vm115 = vmand %vm111, %vm107
  %vm116 = vmand %vm112, %vm108
  %vm117 = vmand %vm113, %vm109
  %v118 = vadd.s32 %v84, 16
  %v119 = vadd.s32 %v91, 16
  %v120 = vadd.s32 %v98, 16
  %v121 = vadd.s32 %v105, 16
  %v122 = vsel %vm114, %v118, %v84
  %v123 = vsel %vm115, %v119, %v91
  %v124 = vsel %vm116, %v120, %v98
  %v125 = vsel %vm117, %v121, %v105
  %vm126 = vcmp.gt.s32.totalorder %v122, 0
  %vm127 = vcmp.gt.s32.totalorder %v123, 0
  %vm128 = vcmp.gt.s32.totalorder %v124, 0
  %vm129 = vcmp.gt.s32.totalorder %v125, 0
  %v130 = vsel %vm126, 1, 0
  %v131 = vsel %vm127, 1, 0
  %v132 = vsel %vm128, 1, 0
  %v133 = vsel %vm129, 1, 0
  %v134 = vcvt.s32.f32 %v130
  %v135 = vcvt.s32.f32 %v131
  %v136 = vcvt.s32.f32 %v132
  %v137 = vcvt.s32.f32 %v133
  %vm138 = vcmp.lt.s32.totalorder %v122, 15
  %vm139 = vcmp.lt.s32.totalorder %v123, 15
  %vm140 = vcmp.lt.s32.totalorder %v124, 15
  %vm141 = vcmp.lt.s32.totalorder %v125, 15
  %v142 = vsel %vm138, 1, 0
  %v143 = vsel %vm139, 1, 0
  %v144 = vsel %vm140, 1, 0
  %v145 = vsel %vm141, 1, 0
  %v146 = vcvt.s32.f32 %v142
  %v147 = vcvt.s32.f32 %v143
  %v148 = vcvt.s32.f32 %v144
  %v149 = vcvt.s32.f32 %v145
  %v150 = vld [vmem:[%s0] sm:$0xff]
  %v151 = vld [vmem:[%s0 + $0x8] sm:$0xff]
  %v152 = vld [vmem:[%s0 + $0x10] sm:$0xff]
  %v153 = vld [vmem:[%s0 + $0x18] sm:$0xff]
  %v154 = vld [vmem:[%s1] sm:$0xff]
  %v155 = vld [vmem:[%s1 + $0x8] sm:$0xff]
  %v156 = vld [vmem:[%s1 + $0x10] sm:$0xff]
  %v157 = vld [vmem:[%s1 + $0x18] sm:$0xff]
  %v158 = vld [vmem:[%s1 + $0x20] sm:$0xff]
  %v159 = vld [vmem:[%s1 + $0x28] sm:$0xff]
  %v160 = vld [vmem:[%s1 + $0x30] sm:$0xff]
  %v161 = vld [vmem:[%s1 + $0x38] sm:$0xff]
  %vm162 = vcmask 523264
  %v164 = vsel %vm162, %v150, 0
  %v167 = vsel %vm162, %v151, 0
  %v170 = vsel %vm162, %v152, 0
  %v173 = vsel %vm162, %v153, 0
  %175 = vmatpush.msra.mxu0 0.0
  %176 = vmatpush.msra.mxu0 0.0
  %177 = vmatpush.msra.mxu0 0.0
  %178 = vmatpush.msra.mxu0 0.0
  %179 = vmatpush.msra.mxu0 0.0
  %180 = vmatpush.msra.mxu0 0.0
  %181 = vmatpush.msra.mxu0 0.0
  %182 = vmatpush.msra.mxu0 0.0
  %183 = vmatpush.msra.mxu0 %v161
  %184 = vmatpush.msra.mxu0 %v160
  %185 = vmatpush.msra.mxu0 %v159
  %186 = vmatpush.msra.mxu0 %v158
  %187 = vmatpush.msra.mxu0 %v157
  %188 = vmatpush.msra.mxu0 %v156
  %189 = vmatpush.msra.mxu0 %v155
  %190 = vmatpush.msra.mxu0 %v154
  %191 = vmatmul.f32.gmra.mxu0 %v164
  %v192 = vpop.f32.mrf.mxu0
  %v193 = vadd.f32 0.0, %v192
  %194 = vmatmul.f32.gmra.mxu0 %v167
  %v195 = vpop.f32.mrf.mxu0
  %v196 = vadd.f32 0.0, %v195
  %197 = vmatmul.f32.gmra.mxu0 %v170
  %v198 = vpop.f32.mrf.mxu0
  %v199 = vadd.f32 0.0, %v198
  %200 = vmatmul.f32.gmra.mxu0 %v173
  %v201 = vpop.f32.mrf.mxu0
  %v202 = vadd.f32 0.0, %v201
  %203 = vdwg.mxu0
  %s204 = scalar_lea.vmem %s1, 64
  %v205 = vld [vmem:[%s204] sm:$0xff]
  %v206 = vld [vmem:[%s204 + $0x8] sm:$0xff]
  %v207 = vld [vmem:[%s204 + $0x10] sm:$0xff]
  %v208 = vld [vmem:[%s204 + $0x18] sm:$0xff]
  %v209 = vld [vmem:[%s204 + $0x20] sm:$0xff]
  %v210 = vld [vmem:[%s204 + $0x28] sm:$0xff]
  %v211 = vld [vmem:[%s204 + $0x30] sm:$0xff]
  %v212 = vld [vmem:[%s204 + $0x38] sm:$0xff]
  %s213 = scalar_lea.vmem %s1, 128
  %v214 = vld [vmem:[%s213] sm:$0xff]
  %v215 = vld [vmem:[%s213 + $0x8] sm:$0xff]
  %v216 = vld [vmem:[%s213 + $0x10] sm:$0xff]
  %v217 = vld [vmem:[%s213 + $0x18] sm:$0xff]
  %v218 = vld [vmem:[%s213 + $0x20] sm:$0xff]
  %v219 = vld [vmem:[%s213 + $0x28] sm:$0xff]
  %v220 = vld [vmem:[%s213 + $0x30] sm:$0xff]
  %v221 = vld [vmem:[%s213 + $0x38] sm:$0xff]
  %222 = vmatpush.msra.mxu0 0.0
  %223 = vmatpush.msra.mxu0 0.0
  %224 = vmatpush.msra.mxu0 0.0
  %225 = vmatpush.msra.mxu0 0.0
  %226 = vmatpush.msra.mxu0 0.0
  %227 = vmatpush.msra.mxu0 0.0
  %228 = vmatpush.msra.mxu0 0.0
  %229 = vmatpush.msra.mxu0 0.0
  %230 = vmatpush.msra.mxu0 %v221
  %231 = vmatpush.msra.mxu0 %v220
  %232 = vmatpush.msra.mxu0 %v219
  %233 = vmatpush.msra.mxu0 %v218
  %234 = vmatpush.msra.mxu0 %v217
  %235 = vmatpush.msra.mxu0 %v216
  %236 = vmatpush.msra.mxu0 %v215
  %237 = vmatpush.msra.mxu0 %v214
  %238 = vmatmul.f32.gmra.mxu0 %v164
  %v239 = vpop.f32.mrf.mxu0
  %v240 = vadd.f32 0.0, %v239
  %241 = vmatmul.f32.gmra.mxu0 %v167
  %v242 = vpop.f32.mrf.mxu0
  %v243 = vadd.f32 0.0, %v242
  %244 = vmatmul.f32.gmra.mxu0 %v170
  %v245 = vpop.f32.mrf.mxu0
  %v246 = vadd.f32 0.0, %v245
  %247 = vmatmul.f32.gmra.mxu0 %v173
  %v248 = vpop.f32.mrf.mxu0
  %v249 = vadd.f32 0.0, %v248
  %250 = vdwg.mxu0
  %v251 = vrot.slane %v193, 7
  %v252 = vrot.slane %v196, 7
  %v253 = vrot.slane %v199, 7
  %v254 = vrot.slane %v202, 7
  %vm255 = vcmp.lt.s32.totalorder %v74, 1
  %v256 = vsel %vm255, %v253, %v254
  %v257 = vsel %vm255, %v252, %v253
  %v258 = vsel %vm255, %v251, %v252
  %v259 = vsel %vm255, %v254, %v251
  %v260 = vmul.f32 %v259, %v134
  %v261 = vmul.f32 %v258, %v135
  %v262 = vmul.f32 %v257, %v136
  %v263 = vmul.f32 %v256, %v137
  %264 = vmatpush.msra.mxu0 0.0
  %265 = vmatpush.msra.mxu0 0.0
  %266 = vmatpush.msra.mxu0 0.0
  %267 = vmatpush.msra.mxu0 0.0
  %268 = vmatpush.msra.mxu0 0.0
  %269 = vmatpush.msra.mxu0 0.0
  %270 = vmatpush.msra.mxu0 0.0
  %271 = vmatpush.msra.mxu0 0.0
  %272 = vmatpush.msra.mxu0 %v212
  %273 = vmatpush.msra.mxu0 %v211
  %274 = vmatpush.msra.mxu0 %v210
  %275 = vmatpush.msra.mxu0 %v209
  %276 = vmatpush.msra.mxu0 %v208
  %277 = vmatpush.msra.mxu0 %v207
  %278 = vmatpush.msra.mxu0 %v206
  %279 = vmatpush.msra.mxu0 %v205
  %280 = vmatmul.f32.gmra.mxu0 %v164
  %v281 = vpop.f32.mrf.mxu0
  %v282 = vadd.f32 %v260, %v281
  %283 = vmatmul.f32.gmra.mxu0 %v167
  %v284 = vpop.f32.mrf.mxu0
  %v285 = vadd.f32 %v261, %v284
  %286 = vmatmul.f32.gmra.mxu0 %v170
  %v287 = vpop.f32.mrf.mxu0
  %v288 = vadd.f32 %v262, %v287
  %289 = vmatmul.f32.gmra.mxu0 %v173
  %v290 = vpop.f32.mrf.mxu0
  %v291 = vadd.f32 %v263, %v290
  %292 = vdwg.mxu0
  %v293 = vrot.slane %v240, 1
  %v294 = vrot.slane %v243, 1
  %v295 = vrot.slane %v246, 1
  %v296 = vrot.slane %v249, 1
  %vm297 = vcmp.lt.s32.totalorder %v74, 7
  %v298 = vsel %vm297, %v295, %v296
  %v299 = vsel %vm297, %v294, %v295
  %v300 = vsel %vm297, %v293, %v294
  %v301 = vsel %vm297, %v296, %v293
  %v302 = vmul.f32 %v300, %v146
  %v303 = vmul.f32 %v299, %v147
  %v304 = vmul.f32 %v298, %v148
  %v305 = vmul.f32 %v301, %v149
  %v306 = vadd.f32 %v282, %v302
  %v307 = vadd.f32 %v285, %v303
  %v308 = vadd.f32 %v288, %v304
  %v309 = vadd.f32 %v291, %v305
  %v310 = vadd.f32 %v306, %v307
  %v311 = vadd.f32 %v310, %v308
  %v312 = vadd.f32 %v311, %v309
  %v313 = vrot.slane %v312, 4
  %v314 = vadd.f32 %v312, %v313
  %v315 = vrot.slane %v314, 2
  %v316 = vadd.f32 %v314, %v315
  %v317 = vrot.slane %v316, 1
  %v318 = vadd.f32 %v316, %v317
  %v319 = vmul.f32 %v306, %v306
  %v320 = vmul.f32 %v307, %v307
  %v321 = vmul.f32 %v308, %v308
  %v322 = vmul.f32 %v309, %v309
  %v323 = vadd.f32 %v319, %v320
  %v324 = vadd.f32 %v323, %v321
  %v325 = vadd.f32 %v324, %v322
  %v326 = vrot.slane %v325, 4
  %v327 = vadd.f32 %v325, %v326
  %v328 = vrot.slane %v327, 2
  %v329 = vadd.f32 %v327, %v328
  %v330 = vrot.slane %v329, 1
  %v331 = vadd.f32 %v329, %v330
  %332 = vmatpush.msra.mxu0 %v56
  %333 = vmatpush.msra.mxu0 %v55
  %334 = vmatpush.msra.mxu0 %v54
  %335 = vmatpush.msra.mxu0 %v53
  %336 = vmatpush.msra.mxu0 %v52
  %337 = vmatpush.msra.mxu0 %v51
  %338 = vmatpush.msra.mxu0 %v50
  %339 = vmatpush.msra.mxu0 %v49
  %340 = vmatpush.msra.mxu0 %v48
  %341 = vmatpush.msra.mxu0 %v47
  %342 = vmatpush.msra.mxu0 %v46
  %343 = vmatpush.msra.mxu0 %v45
  %344 = vmatpush.msra.mxu0 %v44
  %345 = vmatpush.msra.mxu0 %v43
  %346 = vmatpush.msra.mxu0 %v42
  %347 = vmatpush.msra.mxu0 %v41
  %348 = vmatmul.f32.gmra.mxu0 %v318
  %v349 = vpop.f32.mrf.mxu0
  %v350 = vadd.f32 0.0, %v349
  %351 = vdwg.mxu0
  %352 = vmatpush.msra.mxu0 %v56
  %353 = vmatpush.msra.mxu0 %v55
  %354 = vmatpush.msra.mxu0 %v54
  %355 = vmatpush.msra.mxu0 %v53
  %356 = vmatpush.msra.mxu0 %v52
  %357 = vmatpush.msra.mxu0 %v51
  %358 = vmatpush.msra.mxu0 %v50
  %359 = vmatpush.msra.mxu0 %v49
  %360 = vmatpush.msra.mxu0 %v48
  %361 = vmatpush.msra.mxu0 %v47
  %362 = vmatpush.msra.mxu0 %v46
  %363 = vmatpush.msra.mxu0 %v45
  %364 = vmatpush.msra.mxu0 %v44
  %365 = vmatpush.msra.mxu0 %v43
  %366 = vmatpush.msra.mxu0 %v42
  %367 = vmatpush.msra.mxu0 %v41
  %368 = vmatmul.f32.gmra.mxu0 %v331
  %v369 = vpop.f32.mrf.mxu0
  %v370 = vadd.f32 0.0, %v369
  %371 = vdwg.mxu0
  %v372 = vmul.f32 %v350, %v350
  %v373 = vsub.f32 %v370, %v372
  %v374 = vld [vmem:[%s5] sm:$0x1]
  %v375 = vadd.f32 %v373, 1e-05
  %v376 = vrsqrt.pop %v375
  %v377 = vmul.f32 %v376, %v375
  %v378 = vmul.f32 %v377, %v376
  %v379 = vmul.f32 0.5, %v378
  %v380 = vsub.f32 1.5, %v379
  %v381 = vmul.f32 %v376, %v380
  %vm382 = vweird.f32 %v375
  %vm383 = vweird.f32 %v376
  %vm384 = vmor %vm382, %vm383
  %v385 = vsel %vm384, %v376, %v381
  %v386 = vmul.f32 %v374, %v385
  %v387 = vld [vmem:[%s6] sm:$0x1]
  %v388 = vmul.f32 %v350, %v386
  %v389 = vsub.f32 %v387, %v388
  %390 = vmatpush.msra.mxu0 %v72
  %391 = vmatpush.msra.mxu0 %v71
  %392 = vmatpush.msra.mxu0 %v70
  %393 = vmatpush.msra.mxu0 %v69
  %394 = vmatpush.msra.mxu0 %v68
  %395 = vmatpush.msra.mxu0 %v67
  %396 = vmatpush.msra.mxu0 %v66
  %397 = vmatpush.msra.mxu0 %v65
  %398 = vmatpush.msra.mxu0 %v64
  %399 = vmatpush.msra.mxu0 %v63
  %400 = vmatpush.msra.mxu0 %v62
  %401 = vmatpush.msra.mxu0 %v61
  %402 = vmatpush.msra.mxu0 %v60
  %403 = vmatpush.msra.mxu0 %v59
  %404 = vmatpush.msra.mxu0 %v58
  %405 = vmatpush.msra.mxu0 %v57
  %406 = vmatmul.f32.gmra.mxu0 %v386
  %v407 = vpop.f32.mrf.mxu0
  %v408 = vadd.f32 0.0, %v407
  %409 = vdwg.mxu0
  %410 = vmatpush.msra.mxu0 %v72
  %411 = vmatpush.msra.mxu0 %v71
  %412 = vmatpush.msra.mxu0 %v70
  %413 = vmatpush.msra.mxu0 %v69
  %414 = vmatpush.msra.mxu0 %v68
  %415 = vmatpush.msra.mxu0 %v67
  %416 = vmatpush.msra.mxu0 %v66
  %417 = vmatpush.msra.mxu0 %v65
  %418 = vmatpush.msra.mxu0 %v64
  %419 = vmatpush.msra.mxu0 %v63
  %420 = vmatpush.msra.mxu0 %v62
  %421 = vmatpush.msra.mxu0 %v61
  %422 = vmatpush.msra.mxu0 %v60
  %423 = vmatpush.msra.mxu0 %v59
  %424 = vmatpush.msra.mxu0 %v58
  %425 = vmatpush.msra.mxu0 %v57
  %426 = vmatmul.f32.gmra.mxu0 %v389
  %v427 = vpop.f32.mrf.mxu0
  %v428 = vadd.f32 0.0, %v427
  %429 = vdwg.mxu0
  %v430 = vperm.slane %v408, 0
  %v431 = vmul.f32 %v306, %v430
  %v432 = vmul.f32 %v307, %v430
  %v433 = vmul.f32 %v308, %v430
  %v434 = vmul.f32 %v309, %v430
  %v435 = vperm.slane %v428, 0
  %v436 = vadd.f32 %v431, %v435
  %v437 = vadd.f32 %v432, %v435
  %v438 = vadd.f32 %v433, %v435
  %v439 = vadd.f32 %v434, %v435
  %v440 = vmax.f32 %v436, 0.0
  %v441 = vmax.f32 %v437, 0.0
  %v442 = vmax.f32 %v438, 0.0
  %v443 = vmax.f32 %v439, 0.0
  %v444 = vld [vmem:[%s2] sm:$0xff]
  %v445 = vld [vmem:[%s2 + $0x8] sm:$0xff]
  %v446 = vld [vmem:[%s2 + $0x10] sm:$0xff]
  %v447 = vld [vmem:[%s2 + $0x18] sm:$0xff]
  %v448 = vld [vmem:[%s2 + $0x20] sm:$0xff]
  %v449 = vld [vmem:[%s2 + $0x28] sm:$0xff]
  %v450 = vld [vmem:[%s2 + $0x30] sm:$0xff]
  %v451 = vld [vmem:[%s2 + $0x38] sm:$0xff]
  %v452 = vld [vmem:[%s2 + $0x40] sm:$0xff]
  %v453 = vld [vmem:[%s2 + $0x48] sm:$0xff]
  %v454 = vld [vmem:[%s2 + $0x50] sm:$0xff]
  %v455 = vld [vmem:[%s2 + $0x58] sm:$0xff]
  %v456 = vld [vmem:[%s2 + $0x60] sm:$0xff]
  %v457 = vld [vmem:[%s2 + $0x68] sm:$0xff]
  %v458 = vld [vmem:[%s2 + $0x70] sm:$0xff]
  %v459 = vld [vmem:[%s2 + $0x78] sm:$0xff]
  %460 = vmatpush.msra.mxu0 %v459
  %461 = vmatpush.msra.mxu0 %v458
  %462 = vmatpush.msra.mxu0 %v457
  %463 = vmatpush.msra.mxu0 %v456
  %464 = vmatpush.msra.mxu0 %v455
  %465 = vmatpush.msra.mxu0 %v454
  %466 = vmatpush.msra.mxu0 %v453
  %467 = vmatpush.msra.mxu0 %v452
  %468 = vmatpush.msra.mxu0 %v451
  %469 = vmatpush.msra.mxu0 %v450
  %470 = vmatpush.msra.mxu0 %v449
  %471 = vmatpush.msra.mxu0 %v448
  %472 = vmatpush.msra.mxu0 %v447
  %473 = vmatpush.msra.mxu0 %v446
  %474 = vmatpush.msra.mxu0 %v445
  %475 = vmatpush.msra.mxu0 %v444
  %476 = vmatmul.f32.gmra.mxu0 %v440
  %v477 = vpop.f32.mrf.mxu0
  %v478 = vadd.f32 0.0, %v477
  %479 = vmatmul.f32.gmra.mxu0 %v441
  %v480 = vpop.f32.mrf.mxu0
  %v481 = vadd.f32 0.0, %v480
  %482 = vmatmul.f32.gmra.mxu0 %v442
  %v483 = vpop.f32.mrf.mxu0
  %v484 = vadd.f32 0.0, %v483
  %485 = vmatmul.f32.gmra.mxu0 %v443
  %v486 = vpop.f32.mrf.mxu0
  %v487 = vadd.f32 0.0, %v486
  %488 = vdwg.mxu0
  %s489 = scalar_lea.vmem %s2, 128
  %v490 = vld [vmem:[%s489] sm:$0xff]
  %v491 = vld [vmem:[%s489 + $0x8] sm:$0xff]
  %v492 = vld [vmem:[%s489 + $0x10] sm:$0xff]
  %v493 = vld [vmem:[%s489 + $0x18] sm:$0xff]
  %v494 = vld [vmem:[%s489 + $0x20] sm:$0xff]
  %v495 = vld [vmem:[%s489 + $0x28] sm:$0xff]
  %v496 = vld [vmem:[%s489 + $0x30] sm:$0xff]
  %v497 = vld [vmem:[%s489 + $0x38] sm:$0xff]
  %v498 = vld [vmem:[%s489 + $0x40] sm:$0xff]
  %v499 = vld [vmem:[%s489 + $0x48] sm:$0xff]
  %v500 = vld [vmem:[%s489 + $0x50] sm:$0xff]
  %v501 = vld [vmem:[%s489 + $0x58] sm:$0xff]
  %v502 = vld [vmem:[%s489 + $0x60] sm:$0xff]
  %v503 = vld [vmem:[%s489 + $0x68] sm:$0xff]
  %v504 = vld [vmem:[%s489 + $0x70] sm:$0xff]
  %v505 = vld [vmem:[%s489 + $0x78] sm:$0xff]
  %s506 = scalar_lea.vmem %s2, 256
  %v507 = vld [vmem:[%s506] sm:$0xff]
  %v508 = vld [vmem:[%s506 + $0x8] sm:$0xff]
  %v509 = vld [vmem:[%s506 + $0x10] sm:$0xff]
  %v510 = vld [vmem:[%s506 + $0x18] sm:$0xff]
  %v511 = vld [vmem:[%s506 + $0x20] sm:$0xff]
  %v512 = vld [vmem:[%s506 + $0x28] sm:$0xff]
  %v513 = vld [vmem:[%s506 + $0x30] sm:$0xff]
  %v514 = vld [vmem:[%s506 + $0x38] sm:$0xff]
  %v515 = vld [vmem:[%s506 + $0x40] sm:$0xff]
  %v516 = vld [vmem:[%s506 + $0x48] sm:$0xff]
  %v517 = vld [vmem:[%s506 + $0x50] sm:$0xff]
  %v518 = vld [vmem:[%s506 + $0x58] sm:$0xff]
  %v519 = vld [vmem:[%s506 + $0x60] sm:$0xff]
  %v520 = vld [vmem:[%s506 + $0x68] sm:$0xff]
  %v521 = vld [vmem:[%s506 + $0x70] sm:$0xff]
  %v522 = vld [vmem:[%s506 + $0x78] sm:$0xff]
  %523 = vmatpush.msra.mxu0 %v522
  %524 = vmatpush.msra.mxu0 %v521
  %525 = vmatpush.msra.mxu0 %v520
  %526 = vmatpush.msra.mxu0 %v519
  %527 = vmatpush.msra.mxu0 %v518
  %528 = vmatpush.msra.mxu0 %v517
  %529 = vmatpush.msra.mxu0 %v516
  %530 = vmatpush.msra.mxu0 %v515
  %531 = vmatpush.msra.mxu0 %v514
  %532 = vmatpush.msra.mxu0 %v513
  %533 = vmatpush.msra.mxu0 %v512
  %534 = vmatpush.msra.mxu0 %v511
  %535 = vmatpush.msra.mxu0 %v510
  %536 = vmatpush.msra.mxu0 %v509
  %537 = vmatpush.msra.mxu0 %v508
  %538 = vmatpush.msra.mxu0 %v507
  %539 = vmatmul.f32.gmra.mxu0 %v440
  %v540 = vpop.f32.mrf.mxu0
  %v541 = vadd.f32 0.0, %v540
  %542 = vmatmul.f32.gmra.mxu0 %v441
  %v543 = vpop.f32.mrf.mxu0
  %v544 = vadd.f32 0.0, %v543
  %545 = vmatmul.f32.gmra.mxu0 %v442
  %v546 = vpop.f32.mrf.mxu0
  %v547 = vadd.f32 0.0, %v546
  %548 = vmatmul.f32.gmra.mxu0 %v443
  %v549 = vpop.f32.mrf.mxu0
  %v550 = vadd.f32 0.0, %v549
  %551 = vdwg.mxu0
  %v552 = vrot.slane %v478, 7
  %v553 = vrot.slane %v481, 7
  %v554 = vrot.slane %v484, 7
  %v555 = vrot.slane %v487, 7
  %v556 = vsel %vm255, %v554, %v555
  %v557 = vsel %vm255, %v553, %v554
  %v558 = vsel %vm255, %v552, %v553
  %v559 = vsel %vm255, %v555, %v552
  %v560 = vmul.f32 %v559, %v134
  %v561 = vmul.f32 %v558, %v135
  %v562 = vmul.f32 %v557, %v136
  %v563 = vmul.f32 %v556, %v137
  %564 = vmatpush.msra.mxu0 %v505
  %565 = vmatpush.msra.mxu0 %v504
  %566 = vmatpush.msra.mxu0 %v503
  %567 = vmatpush.msra.mxu0 %v502
  %568 = vmatpush.msra.mxu0 %v501
  %569 = vmatpush.msra.mxu0 %v500
  %570 = vmatpush.msra.mxu0 %v499
  %571 = vmatpush.msra.mxu0 %v498
  %572 = vmatpush.msra.mxu0 %v497
  %573 = vmatpush.msra.mxu0 %v496
  %574 = vmatpush.msra.mxu0 %v495
  %575 = vmatpush.msra.mxu0 %v494
  %576 = vmatpush.msra.mxu0 %v493
  %577 = vmatpush.msra.mxu0 %v492
  %578 = vmatpush.msra.mxu0 %v491
  %579 = vmatpush.msra.mxu0 %v490
  %580 = vmatmul.f32.gmra.mxu0 %v440
  %v581 = vpop.f32.mrf.mxu0
  %v582 = vadd.f32 %v560, %v581
  %583 = vmatmul.f32.gmra.mxu0 %v441
  %v584 = vpop.f32.mrf.mxu0
  %v585 = vadd.f32 %v561, %v584
  %586 = vmatmul.f32.gmra.mxu0 %v442
  %v587 = vpop.f32.mrf.mxu0
  %v588 = vadd.f32 %v562, %v587
  %589 = vmatmul.f32.gmra.mxu0 %v443
  %v590 = vpop.f32.mrf.mxu0
  %v591 = vadd.f32 %v563, %v590
  %592 = vdwg.mxu0
  %v593 = vrot.slane %v541, 1
  %v594 = vrot.slane %v544, 1
  %v595 = vrot.slane %v547, 1
  %v596 = vrot.slane %v550, 1
  %v597 = vsel %vm297, %v595, %v596
  %v598 = vsel %vm297, %v594, %v595
  %v599 = vsel %vm297, %v593, %v594
  %v600 = vsel %vm297, %v596, %v593
  %v601 = vmul.f32 %v599, %v146
  %v602 = vmul.f32 %v598, %v147
  %v603 = vmul.f32 %v597, %v148
  %v604 = vmul.f32 %v600, %v149
  %v605 = vadd.f32 %v582, %v601
  %v606 = vadd.f32 %v585, %v602
  %v607 = vadd.f32 %v588, %v603
  %v608 = vadd.f32 %v591, %v604
  %v609 = vadd.f32 %v605, %v606
  %v610 = vadd.f32 %v609, %v607
  %v611 = vadd.f32 %v610, %v608
  %v612 = vrot.slane %v611, 4
  %v613 = vadd.f32 %v611, %v612
  %v614 = vrot.slane %v613, 2
  %v615 = vadd.f32 %v613, %v614
  %v616 = vrot.slane %v615, 1
  %v617 = vadd.f32 %v615, %v616
  %v618 = vmul.f32 %v605, %v605
  %v619 = vmul.f32 %v606, %v606
  %v620 = vmul.f32 %v607, %v607
  %v621 = vmul.f32 %v608, %v608
  %v622 = vadd.f32 %v618, %v619
  %v623 = vadd.f32 %v622, %v620
  %v624 = vadd.f32 %v623, %v621
  %v625 = vrot.slane %v624, 4
  %v626 = vadd.f32 %v624, %v625
  %v627 = vrot.slane %v626, 2
  %v628 = vadd.f32 %v626, %v627
  %v629 = vrot.slane %v628, 1
  %v630 = vadd.f32 %v628, %v629
  %631 = vmatpush.msra.mxu0 %v56
  %632 = vmatpush.msra.mxu0 %v55
  %633 = vmatpush.msra.mxu0 %v54
  %634 = vmatpush.msra.mxu0 %v53
  %635 = vmatpush.msra.mxu0 %v52
  %636 = vmatpush.msra.mxu0 %v51
  %637 = vmatpush.msra.mxu0 %v50
  %638 = vmatpush.msra.mxu0 %v49
  %639 = vmatpush.msra.mxu0 %v48
  %640 = vmatpush.msra.mxu0 %v47
  %641 = vmatpush.msra.mxu0 %v46
  %642 = vmatpush.msra.mxu0 %v45
  %643 = vmatpush.msra.mxu0 %v44
  %644 = vmatpush.msra.mxu0 %v43
  %645 = vmatpush.msra.mxu0 %v42
  %646 = vmatpush.msra.mxu0 %v41
  %647 = vmatmul.f32.gmra.mxu0 %v617
  %v648 = vpop.f32.mrf.mxu0
  %v649 = vadd.f32 0.0, %v648
  %650 = vdwg.mxu0
  %651 = vmatpush.msra.mxu0 %v56
  %652 = vmatpush.msra.mxu0 %v55
  %653 = vmatpush.msra.mxu0 %v54
  %654 = vmatpush.msra.mxu0 %v53
  %655 = vmatpush.msra.mxu0 %v52
  %656 = vmatpush.msra.mxu0 %v51
  %657 = vmatpush.msra.mxu0 %v50
  %658 = vmatpush.msra.mxu0 %v49
  %659 = vmatpush.msra.mxu0 %v48
  %660 = vmatpush.msra.mxu0 %v47
  %661 = vmatpush.msra.mxu0 %v46
  %662 = vmatpush.msra.mxu0 %v45
  %663 = vmatpush.msra.mxu0 %v44
  %664 = vmatpush.msra.mxu0 %v43
  %665 = vmatpush.msra.mxu0 %v42
  %666 = vmatpush.msra.mxu0 %v41
  %667 = vmatmul.f32.gmra.mxu0 %v630
  %v668 = vpop.f32.mrf.mxu0
  %v669 = vadd.f32 0.0, %v668
  %670 = vdwg.mxu0
  %v671 = vmul.f32 %v649, %v649
  %v672 = vsub.f32 %v669, %v671
  %v673 = vld [vmem:[%s7] sm:$0x1]
  %v674 = vadd.f32 %v672, 1e-05
  %v675 = vrsqrt.pop %v674
  %v676 = vmul.f32 %v675, %v674
  %v677 = vmul.f32 %v676, %v675
  %v678 = vmul.f32 0.5, %v677
  %v679 = vsub.f32 1.5, %v678
  %v680 = vmul.f32 %v675, %v679
  %vm681 = vweird.f32 %v674
  %vm682 = vweird.f32 %v675
  %vm683 = vmor %vm681, %vm682
  %v684 = vsel %vm683, %v675, %v680
  %v685 = vmul.f32 %v673, %v684
  %v686 = vld [vmem:[%s8] sm:$0x1]
  %v687 = vmul.f32 %v649, %v685
  %v688 = vsub.f32 %v686, %v687
  %689 = vmatpush.msra.mxu0 %v72
  %690 = vmatpush.msra.mxu0 %v71
  %691 = vmatpush.msra.mxu0 %v70
  %692 = vmatpush.msra.mxu0 %v69
  %693 = vmatpush.msra.mxu0 %v68
  %694 = vmatpush.msra.mxu0 %v67
  %695 = vmatpush.msra.mxu0 %v66
  %696 = vmatpush.msra.mxu0 %v65
  %697 = vmatpush.msra.mxu0 %v64
  %698 = vmatpush.msra.mxu0 %v63
  %699 = vmatpush.msra.mxu0 %v62
  %700 = vmatpush.msra.mxu0 %v61
  %701 = vmatpush.msra.mxu0 %v60
  %702 = vmatpush.msra.mxu0 %v59
  %703 = vmatpush.msra.mxu0 %v58
  %704 = vmatpush.msra.mxu0 %v57
  %705 = vmatmul.f32.gmra.mxu0 %v685
  %v706 = vpop.f32.mrf.mxu0
  %v707 = vadd.f32 0.0, %v706
  %708 = vdwg.mxu0
  %709 = vmatpush.msra.mxu0 %v72
  %710 = vmatpush.msra.mxu0 %v71
  %711 = vmatpush.msra.mxu0 %v70
  %712 = vmatpush.msra.mxu0 %v69
  %713 = vmatpush.msra.mxu0 %v68
  %714 = vmatpush.msra.mxu0 %v67
  %715 = vmatpush.msra.mxu0 %v66
  %716 = vmatpush.msra.mxu0 %v65
  %717 = vmatpush.msra.mxu0 %v64
  %718 = vmatpush.msra.mxu0 %v63
  %719 = vmatpush.msra.mxu0 %v62
  %720 = vmatpush.msra.mxu0 %v61
  %721 = vmatpush.msra.mxu0 %v60
  %722 = vmatpush.msra.mxu0 %v59
  %723 = vmatpush.msra.mxu0 %v58
  %724 = vmatpush.msra.mxu0 %v57
  %725 = vmatmul.f32.gmra.mxu0 %v688
  %v726 = vpop.f32.mrf.mxu0
  %v727 = vadd.f32 0.0, %v726
  %728 = vdwg.mxu0
  %v729 = vperm.slane %v707, 0
  %v730 = vmul.f32 %v605, %v729
  %v731 = vmul.f32 %v606, %v729
  %v732 = vmul.f32 %v607, %v729
  %v733 = vmul.f32 %v608, %v729
  %v734 = vperm.slane %v727, 0
  %v735 = vadd.f32 %v730, %v734
  %v736 = vadd.f32 %v731, %v734
  %v737 = vadd.f32 %v732, %v734
  %v738 = vadd.f32 %v733, %v734
  %v739 = vld [vmem:[%s9] sm:$0xff]
  %v740 = vld [vmem:[%s9 + $0x8] sm:$0xff]
  %v741 = vld [vmem:[%s9 + $0x10] sm:$0xff]
  %v742 = vld [vmem:[%s9 + $0x18] sm:$0xff]
  %v743 = vld [vmem:[%s9 + $0x20] sm:$0xff]
  %v744 = vld [vmem:[%s9 + $0x28] sm:$0xff]
  %v745 = vld [vmem:[%s9 + $0x30] sm:$0xff]
  %v746 = vld [vmem:[%s9 + $0x38] sm:$0xff]
  %747 = vmatpush.msra.mxu0 0.0
  %748 = vmatpush.msra.mxu0 0.0
  %749 = vmatpush.msra.mxu0 0.0
  %750 = vmatpush.msra.mxu0 0.0
  %751 = vmatpush.msra.mxu0 0.0
  %752 = vmatpush.msra.mxu0 0.0
  %753 = vmatpush.msra.mxu0 0.0
  %754 = vmatpush.msra.mxu0 0.0
  %755 = vmatpush.msra.mxu0 %v746
  %756 = vmatpush.msra.mxu0 %v745
  %757 = vmatpush.msra.mxu0 %v744
  %758 = vmatpush.msra.mxu0 %v743
  %759 = vmatpush.msra.mxu0 %v742
  %760 = vmatpush.msra.mxu0 %v741
  %761 = vmatpush.msra.mxu0 %v740
  %762 = vmatpush.msra.mxu0 %v739
  %763 = vmatmul.f32.gmra.mxu0 %v164
  %v764 = vpop.f32.mrf.mxu0
  %v765 = vadd.f32 0.0, %v764
  %766 = vmatmul.f32.gmra.mxu0 %v167
  %v767 = vpop.f32.mrf.mxu0
  %v768 = vadd.f32 0.0, %v767
  %769 = vmatmul.f32.gmra.mxu0 %v170
  %v770 = vpop.f32.mrf.mxu0
  %v771 = vadd.f32 0.0, %v770
  %772 = vmatmul.f32.gmra.mxu0 %v173
  %v773 = vpop.f32.mrf.mxu0
  %v774 = vadd.f32 0.0, %v773
  %775 = vdwg.mxu0
  %v776 = vadd.f32 %v765, %v768
  %v777 = vadd.f32 %v776, %v771
  %v778 = vadd.f32 %v777, %v774
  %v779 = vrot.slane %v778, 4
  %v780 = vadd.f32 %v778, %v779
  %v781 = vrot.slane %v780, 2
  %v782 = vadd.f32 %v780, %v781
  %v783 = vrot.slane %v782, 1
  %v784 = vadd.f32 %v782, %v783
  %v785 = vmul.f32 %v765, %v765
  %v786 = vmul.f32 %v768, %v768
  %v787 = vmul.f32 %v771, %v771
  %v788 = vmul.f32 %v774, %v774
  %v789 = vadd.f32 %v785, %v786
  %v790 = vadd.f32 %v789, %v787
  %v791 = vadd.f32 %v790, %v788
  %v792 = vrot.slane %v791, 4
  %v793 = vadd.f32 %v791, %v792
  %v794 = vrot.slane %v793, 2
  %v795 = vadd.f32 %v793, %v794
  %v796 = vrot.slane %v795, 1
  %v797 = vadd.f32 %v795, %v796
  %798 = vmatpush.msra.mxu0 %v56
  %799 = vmatpush.msra.mxu0 %v55
  %800 = vmatpush.msra.mxu0 %v54
  %801 = vmatpush.msra.mxu0 %v53
  %802 = vmatpush.msra.mxu0 %v52
  %803 = vmatpush.msra.mxu0 %v51
  %804 = vmatpush.msra.mxu0 %v50
  %805 = vmatpush.msra.mxu0 %v49
  %806 = vmatpush.msra.mxu0 %v48
  %807 = vmatpush.msra.mxu0 %v47
  %808 = vmatpush.msra.mxu0 %v46
  %809 = vmatpush.msra.mxu0 %v45
  %810 = vmatpush.msra.mxu0 %v44
  %811 = vmatpush.msra.mxu0 %v43
  %812 = vmatpush.msra.mxu0 %v42
  %813 = vmatpush.msra.mxu0 %v41
  %814 = vmatmul.f32.gmra.mxu0 %v784
  %v815 = vpop.f32.mrf.mxu0
  %v816 = vadd.f32 0.0, %v815
  %817 = vdwg.mxu0
  %818 = vmatpush.msra.mxu0 %v56
  %819 = vmatpush.msra.mxu0 %v55
  %820 = vmatpush.msra.mxu0 %v54
  %821 = vmatpush.msra.mxu0 %v53
  %822 = vmatpush.msra.mxu0 %v52
  %823 = vmatpush.msra.mxu0 %v51
  %824 = vmatpush.msra.mxu0 %v50
  %825 = vmatpush.msra.mxu0 %v49
  %826 = vmatpush.msra.mxu0 %v48
  %827 = vmatpush.msra.mxu0 %v47
  %828 = vmatpush.msra.mxu0 %v46
  %829 = vmatpush.msra.mxu0 %v45
  %830 = vmatpush.msra.mxu0 %v44
  %831 = vmatpush.msra.mxu0 %v43
  %832 = vmatpush.msra.mxu0 %v42
  %833 = vmatpush.msra.mxu0 %v41
  %834 = vmatmul.f32.gmra.mxu0 %v797
  %v835 = vpop.f32.mrf.mxu0
  %v836 = vadd.f32 0.0, %v835
  %837 = vdwg.mxu0
  %v838 = vmul.f32 %v816, %v816
  %v839 = vsub.f32 %v836, %v838
  %v840 = vld [vmem:[%s10] sm:$0x1]
  %v841 = vadd.f32 %v839, 1e-05
  %v842 = vrsqrt.pop %v841
  %v843 = vmul.f32 %v842, %v841
  %v844 = vmul.f32 %v843, %v842
  %v845 = vmul.f32 0.5, %v844
  %v846 = vsub.f32 1.5, %v845
  %v847 = vmul.f32 %v842, %v846
  %vm848 = vweird.f32 %v841
  %vm849 = vweird.f32 %v842
  %vm850 = vmor %vm848, %vm849
  %v851 = vsel %vm850, %v842, %v847
  %v852 = vmul.f32 %v840, %v851
  %v853 = vld [vmem:[%s11] sm:$0x1]
  %v854 = vmul.f32 %v816, %v852
  %v855 = vsub.f32 %v853, %v854
  %856 = vmatpush.msra.mxu0 %v72
  %857 = vmatpush.msra.mxu0 %v71
  %858 = vmatpush.msra.mxu0 %v70
  %859 = vmatpush.msra.mxu0 %v69
  %860 = vmatpush.msra.mxu0 %v68
  %861 = vmatpush.msra.mxu0 %v67
  %862 = vmatpush.msra.mxu0 %v66
  %863 = vmatpush.msra.mxu0 %v65
  %864 = vmatpush.msra.mxu0 %v64
  %865 = vmatpush.msra.mxu0 %v63
  %866 = vmatpush.msra.mxu0 %v62
  %867 = vmatpush.msra.mxu0 %v61
  %868 = vmatpush.msra.mxu0 %v60
  %869 = vmatpush.msra.mxu0 %v59
  %870 = vmatpush.msra.mxu0 %v58
  %871 = vmatpush.msra.mxu0 %v57
  %872 = vmatmul.f32.gmra.mxu0 %v852
  %v873 = vpop.f32.mrf.mxu0
  %v874 = vadd.f32 0.0, %v873
  %875 = vdwg.mxu0
  %876 = vmatpush.msra.mxu0 %v72
  %877 = vmatpush.msra.mxu0 %v71
  %878 = vmatpush.msra.mxu0 %v70
  %879 = vmatpush.msra.mxu0 %v69
  %880 = vmatpush.msra.mxu0 %v68
  %881 = vmatpush.msra.mxu0 %v67
  %882 = vmatpush.msra.mxu0 %v66
  %883 = vmatpush.msra.mxu0 %v65
  %884 = vmatpush.msra.mxu0 %v64
  %885 = vmatpush.msra.mxu0 %v63
  %886 = vmatpush.msra.mxu0 %v62
  %887 = vmatpush.msra.mxu0 %v61
  %888 = vmatpush.msra.mxu0 %v60
  %889 = vmatpush.msra.mxu0 %v59
  %890 = vmatpush.msra.mxu0 %v58
  %891 = vmatpush.msra.mxu0 %v57
  %892 = vmatmul.f32.gmra.mxu0 %v855
  %v893 = vpop.f32.mrf.mxu0
  %v894 = vadd.f32 0.0, %v893
  %895 = vdwg.mxu0
  %v896 = vperm.slane %v874, 0
  %v897 = vmul.f32 %v765, %v896
  %v898 = vmul.f32 %v768, %v896
  %v899 = vmul.f32 %v771, %v896
  %v900 = vmul.f32 %v774, %v896
  %v901 = vperm.slane %v894, 0
  %v902 = vadd.f32 %v897, %v901
  %v903 = vadd.f32 %v898, %v901
  %v904 = vadd.f32 %v899, %v901
  %v905 = vadd.f32 %v900, %v901
  %v906 = vadd.f32 %v735, %v902
  %v907 = vadd.f32 %v736, %v903
  %v908 = vadd.f32 %v737, %v904
  %v909 = vadd.f32 %v738, %v905
  %v910 = vmax.f32 %v906, 0.0
  %v911 = vmax.f32 %v907, 0.0
  %v912 = vmax.f32 %v908, 0.0
  %v913 = vmax.f32 %v909, 0.0
  %914 = vst [vmem:[%s12] sm:$0xff] %v910
  %915 = vst [vmem:[%s12 + $0x8] sm:$0xff] %v911
  %916 = vst [vmem:[%s12 + $0x10] sm:$0xff] %v912
  %917 = vst [vmem:[%s12 + $0x18] sm:$0xff] %v913
  // Predicated region
  $region50: #{basic_block_pallas.1} parent=0 // pred_check
    _
  $region51: #{basic_block_pallas.1} parent=0 // pred_check_branch
    %919 = sbr.rel (0) target = $region53
  $region52: #{basic_block_pallas.1} parent=0 // pred_region
    _
  $region53: #{basic_block_pallas.1} parent=0 // pred_fallthru
    _
  // Predicated region
  $region54: #{basic_block_pallas.1} parent=0 // pred_check
    _
  $region55: #{basic_block_pallas.1} parent=0 // pred_check_branch
    %921 = sbr.rel (0) target = $region57
  $region56: #{basic_block_pallas.1} parent=0 // pred_region
    _
  $region57: #{basic_block_pallas.1} parent=0 // pred_fallthru
    _

</llo_original>
